<compile_context>
chip_gen: v5e
topology: v5e:2x2
jax: 0.10.0
libtpu: 0.0.40
codegen_flags: <defaults>
</compile_context>

<pallas_src>
import math

import jax
import jax.numpy as jnp
from jax.experimental import pallas as pl
from jax.experimental.pallas import tpu as pltpu


def make_positional_encoding_table(d_model: int, max_len: int = 5000, T: int = 10000):
    """Same (max_len + 1, d_model) sin/cos buffer as the PyTorch module builds."""
    position = jnp.arange(max_len, dtype=jnp.float32)[:, None]               # (max_len, 1)
    div_term = jnp.exp(jnp.arange(0, d_model, 2, dtype=jnp.float32)
                       * (-math.log(T) / d_model))                           # (d_model//2,)
    pe = jnp.zeros((max_len + 1, d_model), jnp.float32)
    pe = pe.at[1:, 0::2].set(jnp.sin(position * div_term))
    pe = pe.at[1:, 1::2].set(jnp.cos(position * div_term))
    return pe


def _pe_gather_kernel(doy_ref, pe_ref, o_ref):
    """One grid step: gather tile_pack * G table rows, store one lane-dense tile.

    doy_ref: VMEM (tile_pack, G) int32    -- this tile's indices
    pe_ref : VMEM (rows_pad, d_model)     -- full table, resident across the grid
    o_ref  : VMEM (tile_pack, G*d_model)  -- packed (lane-dense) output tile
    """
    tile_pack, G = doy_ref.shape
    rows_pad, d_model = pe_ref.shape

    pe = pe_ref[...]
    idx = doy_ref[...]

    # One-hot selection weights: exact 1.0 / 0.0 -> gather reproduced on the MXU.
    row_iota = jax.lax.broadcasted_iota(jnp.int32, (tile_pack, rows_pad), 1)

    parts = []
    for g in range(G):                       # static loop, G = 128 // d_model (small)
        onehot = jnp.where(row_iota == idx[:, g:g + 1], 1.0, 0.0).astype(pe.dtype)
        parts.append(
            jnp.dot(onehot, pe,
                    preferred_element_type=jnp.float32,
                    precision=jax.lax.Precision.HIGHEST))
    out = parts[0] if G == 1 else jnp.concatenate(parts, axis=1)
    o_ref[...] = out.astype(o_ref.dtype)     # single dense full-tile store


def _round_up(x, m):
    return ((x + m - 1) // m) * m


def positional_encoding_forward(doy, pe, *, max_tile_rows: int = 1024):
    """doy: (B, S) integer indices into pe; pe: (max_len+1, d_model) -> (B, S, d_model)."""
    B, S = doy.shape
    n_rows, d_model = pe.shape
    N = B * S

    # Lane-packing factor: pack G gathered rows per output row so the output's
    # last dim is a dense 128 lanes (unmasked stores).
    if d_model < 128 and 128 % d_model == 0:
        G = 128 // d_model
    else:
        G = 1

    n_pack = pl.cdiv(N, G)                        # packed output rows needed
    max_tile_pack = max(8, max_tile_rows // G)    # packed rows per grid step
    if n_pack <= max_tile_pack:
        tile_pack = n_pack                        # single tile: full-array block allowed
    else:
        tile_pack = max(8, (max_tile_pack // 8) * 8)
    n_pack_pad = _round_up(n_pack, tile_pack)
    n_tiles = n_pack_pad // tile_pack
    n_pad = n_pack_pad * G

    flat = doy.reshape(N).astype(jnp.int32)
    if n_pad != N:
        # Pad with index 0 (pe[0] is the all-zeros padding row); sliced off below.
        flat = jnp.concatenate([flat, jnp.zeros((n_pad - N,), jnp.int32)])
    doy2d = flat.reshape(n_pack_pad, G)

    # Pad table rows to a sublane multiple for layout friendliness (the padded
    # rows can never be selected because doy < n_rows).
    rows_pad = _round_up(n_rows, 8)
    pe_p = pe if rows_pad == n_rows else jnp.concatenate(
        [pe, jnp.zeros((rows_pad - n_rows, d_model), pe.dtype)], axis=0)

    itemsize = pe_p.dtype.itemsize
    try:
        vmem_cap = int(pltpu.get_tpu_info().vmem_capacity_bytes)
    except Exception:                  # be conservative: v7x per-core capacity
        vmem_cap = 64 * 2**20
    vmem_needed = (
        2 * rows_pad * d_model * itemsize          # resident table (2 bufs by default)
        + 2 * tile_pack * G * d_model * itemsize   # double-buffered output tiles
        + 2 * tile_pack * G * 4                    # double-buffered index tiles
        + (4 << 20))                               # headroom
    vmem_limit = int(min(max(vmem_needed, 16 << 20), vmem_cap - (8 << 20)))

    out_packed = pl.pallas_call(
        _pe_gather_kernel,
        out_shape=jax.ShapeDtypeStruct((n_pack_pad, G * d_model), pe.dtype),
        grid=(n_tiles,),
        in_specs=[
            pl.BlockSpec((tile_pack, G), lambda i: (i, 0)),
            # Constant block index -> table DMA'd once, stays VMEM-resident.
            pl.BlockSpec((rows_pad, d_model), lambda i: (0, 0)),
        ],
        out_specs=pl.BlockSpec((tile_pack, G * d_model), lambda i: (i, 0)),
        compiler_params=pltpu.CompilerParams(
            dimension_semantics=("parallel",),   # rows independent -> 2-TC split on v7x
            vmem_limit_bytes=vmem_limit,
        ),
    )(doy2d, pe_p)

    out = out_packed.reshape(n_pad, d_model)
    if n_pad != N:
        out = out[:N]
    return out.reshape(B, S, d_model)


if __name__ == "__main__":
    B, S, d_model, max_len = 2, 32, 32, 127

    key = jax.random.PRNGKey(0)
    pe = make_positional_encoding_table(d_model, max_len=max_len, T=10000)   # (128, 32)
    doy = jax.random.randint(key, (B, S), 0, max_len + 1, dtype=jnp.int32)

    out = jax.block_until_ready(positional_encoding_forward(doy, pe))

    ref = jnp.take(pe, doy, axis=0)    # == self.pe[doy] in the PyTorch module
    assert out.shape == (B, S, d_model)
    assert out.dtype == pe.dtype
    err = float(jnp.max(jnp.abs(out - ref)))
    assert jnp.allclose(out, ref, rtol=1e-5, atol=1e-5), err

    print("KERNEL_OK")
</pallas_src>

<mosaic_0001>
module attributes {stable_mosaic.version = 11 : i64} {
  func.func @_pe_gather_kernel(%arg0: i32, %arg1: memref<16x4xi32, #tpu.memory_space<vmem>>, %arg2: memref<128x32xf32, #tpu.memory_space<vmem>>, %arg3: memref<16x128xf32, #tpu.memory_space<vmem>>) attributes {dimension_semantics = [#tpu.dimension_semantics<parallel>], iteration_bounds = array<i64: 1>, scalar_prefetch = 0 : i64, scratch_operands = 0 : i64, tpu.core_type = #tpu.core_type<tc>, window_params = [{transform_indices = @transform_0, window_bounds = array<i64: 16, 4>}, {pipeline_mode = #tpu.pipeline_mode<synchronous>, transform_indices = @transform_1, window_bounds = array<i64: 128, 32>}, {transform_indices = @transform_2, window_bounds = array<i64: 16, 128>}]} {
    %c0 = arith.constant 0 : index
    %c0_0 = arith.constant 0 : index
    %0 = vector.load %arg2[%c0, %c0_0] : memref<128x32xf32, #tpu.memory_space<vmem>>, vector<128x32xf32>
    %c0_1 = arith.constant 0 : index
    %c0_2 = arith.constant 0 : index
    %1 = vector.load %arg1[%c0_1, %c0_2] : memref<16x4xi32, #tpu.memory_space<vmem>>, vector<16x4xi32>
    %2 = tpu.iota {dimensions = array<i32: 1>} : vector<16x128xi32>
    %3 = vector.extract_strided_slice %1 {offsets = [0, 0], sizes = [16, 1], strides = [1, 1]} : vector<16x4xi32> to vector<16x1xi32>
    %4 = vector.broadcast %3 : vector<16x1xi32> to vector<16x128xi32>
    %5 = arith.cmpi eq, %2, %4 : vector<16x128xi32>
    %cst = arith.constant 1.000000e+00 : f32
    %cst_3 = arith.constant 0.000000e+00 : f32
    %6 = vector.broadcast %cst : f32 to vector<16x128xf32>
    %7 = vector.broadcast %cst_3 : f32 to vector<16x128xf32>
    %8 = arith.select %5, %6, %7 : vector<16x128xi1>, vector<16x128xf32>
    %cst_4 = arith.constant dense<0.000000e+00> : vector<16x32xf32>
    %9 = tpu.matmul %8, %0, %cst_4 {dimension_numbers = #tpu.dot_dimension_numbers<[1], [0], [0], [1], [0, 0, 1, 1], [], []>, precision = #tpu.contract_precision<fp32>} : vector<16x128xf32>, vector<128x32xf32>, vector<16x32xf32> -> vector<16x32xf32>
    %10 = vector.extract_strided_slice %1 {offsets = [0, 1], sizes = [16, 1], strides = [1, 1]} : vector<16x4xi32> to vector<16x1xi32>
    %11 = vector.broadcast %10 : vector<16x1xi32> to vector<16x128xi32>
    %12 = arith.cmpi eq, %2, %11 : vector<16x128xi32>
    %cst_5 = arith.constant 1.000000e+00 : f32
    %cst_6 = arith.constant 0.000000e+00 : f32
    %13 = vector.broadcast %cst_5 : f32 to vector<16x128xf32>
    %14 = vector.broadcast %cst_6 : f32 to vector<16x128xf32>
    %15 = arith.select %12, %13, %14 : vector<16x128xi1>, vector<16x128xf32>
    %cst_7 = arith.constant dense<0.000000e+00> : vector<16x32xf32>
    %16 = tpu.matmul %15, %0, %cst_7 {dimension_numbers = #tpu.dot_dimension_numbers<[1], [0], [0], [1], [0, 0, 1, 1], [], []>, precision = #tpu.contract_precision<fp32>} : vector<16x128xf32>, vector<128x32xf32>, vector<16x32xf32> -> vector<16x32xf32>
    %17 = vector.extract_strided_slice %1 {offsets = [0, 2], sizes = [16, 1], strides = [1, 1]} : vector<16x4xi32> to vector<16x1xi32>
    %18 = vector.broadcast %17 : vector<16x1xi32> to vector<16x128xi32>
    %19 = arith.cmpi eq, %2, %18 : vector<16x128xi32>
    %cst_8 = arith.constant 1.000000e+00 : f32
    %cst_9 = arith.constant 0.000000e+00 : f32
    %20 = vector.broadcast %cst_8 : f32 to vector<16x128xf32>
    %21 = vector.broadcast %cst_9 : f32 to vector<16x128xf32>
    %22 = arith.select %19, %20, %21 : vector<16x128xi1>, vector<16x128xf32>
    %cst_10 = arith.constant dense<0.000000e+00> : vector<16x32xf32>
    %23 = tpu.matmul %22, %0, %cst_10 {dimension_numbers = #tpu.dot_dimension_numbers<[1], [0], [0], [1], [0, 0, 1, 1], [], []>, precision = #tpu.contract_precision<fp32>} : vector<16x128xf32>, vector<128x32xf32>, vector<16x32xf32> -> vector<16x32xf32>
    %24 = vector.extract_strided_slice %1 {offsets = [0, 3], sizes = [16, 1], strides = [1, 1]} : vector<16x4xi32> to vector<16x1xi32>
    %25 = vector.broadcast %24 : vector<16x1xi32> to vector<16x128xi32>
    %26 = arith.cmpi eq, %2, %25 : vector<16x128xi32>
    %cst_11 = arith.constant 1.000000e+00 : f32
    %cst_12 = arith.constant 0.000000e+00 : f32
    %27 = vector.broadcast %cst_11 : f32 to vector<16x128xf32>
    %28 = vector.broadcast %cst_12 : f32 to vector<16x128xf32>
    %29 = arith.select %26, %27, %28 : vector<16x128xi1>, vector<16x128xf32>
    %cst_13 = arith.constant dense<0.000000e+00> : vector<16x32xf32>
    %30 = tpu.matmul %29, %0, %cst_13 {dimension_numbers = #tpu.dot_dimension_numbers<[1], [0], [0], [1], [0, 0, 1, 1], [], []>, precision = #tpu.contract_precision<fp32>} : vector<16x128xf32>, vector<128x32xf32>, vector<16x32xf32> -> vector<16x32xf32>
    %31 = tpu.concatenate %9, %16, %23, %30 in 1 : vector<16x32xf32>, vector<16x32xf32>, vector<16x32xf32>, vector<16x32xf32> -> vector<16x128xf32>
    %c0_14 = arith.constant 0 : index
    %c0_15 = arith.constant 0 : index
    %32 = vector.load %arg3[%c0_14, %c0_15] : memref<16x128xf32, #tpu.memory_space<vmem>>, vector<16x128xf32>
    tpu.vector_store %arg3[%c0_14, %c0_15], %31 {strides = array<i32>} : memref<16x128xf32, #tpu.memory_space<vmem>>, vector<16x128xf32>,
    return
  }
  func.func @transform_0(%arg0: i32) -> (i32, i32) {
    %c0_i32 = arith.constant 0 : i32
    %c0_i32_0 = arith.constant 0 : i32
    return %arg0, %c0_i32 : i32, i32
  }
  func.func @transform_1(%arg0: i32) -> (i32, i32) {
    %c0_i32 = arith.constant 0 : i32
    %c0_i32_0 = arith.constant 0 : i32
    %c0_i32_1 = arith.constant 0 : i32
    return %c0_i32, %c0_i32_0 : i32, i32
  }
  func.func @transform_2(%arg0: i32) -> (i32, i32) {
    %c0_i32 = arith.constant 0 : i32
    %c0_i32_0 = arith.constant 0 : i32
    return %arg0, %c0_i32 : i32, i32
  }
}

</mosaic_0001>

<llo_original>
// kernel: tpu_custom_call.1
$region0: #{tpu_custom_call.1}
  #allocation0 [shape = 'u32[]', space=smem, size = 0x4, offset = 0x4, fixed_abs, tag = 'smem constant byte address 0x4 - core index']
  #allocation1 [shape = 'u32[72,128]{1,0:T(1,128)}', space=vmem, size = 0x9000, scoped, tag = 'internal scratch']
  %s0 = inlined_call_operand.vmem [shape: s32[16,4], index: 0, kind: input, shape index: {}]
  %s1 = inlined_call_operand.vmem [shape: f32[128,32], index: 1, kind: input, shape index: {}]
  %s2 = inlined_call_operand.hbm [shape: f32[16,128], index: 2, kind: output, shape index: {}]
  %s3 = sld [smem:[#allocation0]]
  $region18: #{tpu_custom_call.1} parent=0
    _
  %s5 = ssub.s32 1, %s3
  %s6 = scalar_select 0, %s5, %s3
  $region1: #{tpu_custom_call.1} parent=0
    #allocation2 [shape = 'u8[8192]{0}', space=vmem, size = 0x2000, scoped, tag = 'output window, operand 0, single buffered']
    #allocation3 [shape = 's32[1]{0}', space=sflag, size = 0x4, scoped, tag = 'scoped memory for tpu_custom_call.1']
    %7 = vsyncpa [#allocation3], 0
    // Predicated region
    $region2: #{tpu_custom_call.1} parent=1 // pred_check
      _
    $region3: #{tpu_custom_call.1} parent=1 // pred_check_branch
      %9 = sbr.rel (0) target = $region5
    $region4: #{tpu_custom_call.1} parent=1 // pred_region
      _
    $region5: #{tpu_custom_call.1} parent=1 // pred_fallthru
      _
    // Predicated region
    $region6: #{tpu_custom_call.1} parent=1 // pred_check
      _
    $region7: #{tpu_custom_call.1} parent=1 // pred_check_branch
      %11 = sbr.rel (0) target = $region9
    $region8: #{tpu_custom_call.1} parent=1 // pred_region
      _
    $region9: #{tpu_custom_call.1} parent=1 // pred_fallthru
      _
    %v12 = vld [vmem:[%s1] sm:$0xff]
    %v13 = vld [vmem:[%s1 + $0x8] sm:$0xff]
    %v14 = vld [vmem:[%s1 + $0x10] sm:$0xff]
    %v15 = vld [vmem:[%s1 + $0x18] sm:$0xff]
    %v16 = vld [vmem:[%s1 + $0x20] sm:$0xff]
    %v17 = vld [vmem:[%s1 + $0x28] sm:$0xff]
    %v18 = vld [vmem:[%s1 + $0x30] sm:$0xff]
    %v19 = vld [vmem:[%s1 + $0x38] sm:$0xff]
    %v20 = vld [vmem:[%s1 + $0x40] sm:$0xff]
    %v21 = vld [vmem:[%s1 + $0x48] sm:$0xff]
    %v22 = vld [vmem:[%s1 + $0x50] sm:$0xff]
    %v23 = vld [vmem:[%s1 + $0x58] sm:$0xff]
    %v24 = vld [vmem:[%s1 + $0x60] sm:$0xff]
    %v25 = vld [vmem:[%s1 + $0x68] sm:$0xff]
    %v26 = vld [vmem:[%s1 + $0x70] sm:$0xff]
    %v27 = vld [vmem:[%s1 + $0x78] sm:$0xff]
    %v28 = vld [vmem:[%s0] sm:$0xff]
    %v29 = vld [vmem:[%s0 + $0x8] sm:$0xff]
    %v30 = vlaneseq
    %v31 = vand.u32 %v30, 127
    %32 = vset.pattern.permute.xlu0 0
    %33 = vperm.xlu0 %32, %v28
    %v34 = vpop.permute.xlu0 %33
    %35 = vset.pattern.permute.xlu0 0
    %36 = vperm.xlu0 %35, %v29
    %v37 = vpop.permute.xlu0 %36
    %vm38 = vcmp.eq.s32.totalorder %v31, %v34
    %vm39 = vcmp.eq.s32.totalorder %v31, %v37
    %v40 = vsel %vm38, 1.0, 0.0
    %v41 = vsel %vm39, 1.0, 0.0
    %v42 = vand.u32 %v27, 4294901760
    %43 = vmatpush.msra.mxu0 %v42
    %v44 = vand.u32 %v26, 4294901760
    %45 = vmatpush.msra.mxu0 %v44
    %v46 = vand.u32 %v25, 4294901760
    %47 = vmatpush.msra.mxu0 %v46
    %v48 = vand.u32 %v24, 4294901760
    %49 = vmatpush.msra.mxu0 %v48
    %v50 = vand.u32 %v23, 4294901760
    %51 = vmatpush.msra.mxu0 %v50
    %v52 = vand.u32 %v22, 4294901760
    %53 = vmatpush.msra.mxu0 %v52
    %v54 = vand.u32 %v21, 4294901760
    %55 = vmatpush.msra.mxu0 %v54
    %v56 = vand.u32 %v20, 4294901760
    %57 = vmatpush.msra.mxu0 %v56
    %v58 = vand.u32 %v19, 4294901760
    %59 = vmatpush.msra.mxu0 %v58
    %v60 = vand.u32 %v18, 4294901760
    %61 = vmatpush.msra.mxu0 %v60
    %v62 = vand.u32 %v17, 4294901760
    %63 = vmatpush.msra.mxu0 %v62
    %v64 = vand.u32 %v16, 4294901760
    %65 = vmatpush.msra.mxu0 %v64
    %v66 = vand.u32 %v15, 4294901760
    %67 = vmatpush.msra.mxu0 %v66
    %v68 = vand.u32 %v14, 4294901760
    %69 = vmatpush.msra.mxu0 %v68
    %v70 = vand.u32 %v13, 4294901760
    %71 = vmatpush.msra.mxu0 %v70
    %v72 = vand.u32 %v12, 4294901760
    %73 = vmatpush.msra.mxu0 %v72
    %v74 = vsub.f32 %v40, %v40
    %v75 = vand.u32 %v74, 4294901760
    %v76 = vsub.f32 %v74, %v75
    %v77 = vand.u32 %v76, 4294901760
    %78 = vmatmul.f32.gmra.mxu0 %v77
    %v79 = vpop.f32.mrf.mxu0
    %v80 = vadd.f32 0.0, %v79
    %v81 = vsub.f32 %v41, %v41
    %v82 = vand.u32 %v81, 4294901760
    %v83 = vsub.f32 %v81, %v82
    %v84 = vand.u32 %v83, 4294901760
    %85 = vmatmul.f32.gmra.mxu0 %v84
    %v86 = vpop.f32.mrf.mxu0
    %v87 = vadd.f32 0.0, %v86
    %88 = vdwg.mxu0
    %v89 = vand.u32 %v27, 4294901760
    %v90 = vsub.f32 %v27, %v89
    %v91 = vand.u32 %v90, 4294901760
    %v92 = vsub.f32 %v90, %v91
    %v93 = vand.u32 %v92, 4294901760
    %94 = vmatpush.msra.mxu0 %v93
    %v95 = vand.u32 %v26, 4294901760
    %v96 = vsub.f32 %v26, %v95
    %v97 = vand.u32 %v96, 4294901760
    %v98 = vsub.f32 %v96, %v97
    %v99 = vand.u32 %v98, 4294901760
    %100 = vmatpush.msra.mxu0 %v99
    %v101 = vand.u32 %v25, 4294901760
    %v102 = vsub.f32 %v25, %v101
    %v103 = vand.u32 %v102, 4294901760
    %v104 = vsub.f32 %v102, %v103
    %v105 = vand.u32 %v104, 4294901760
    %106 = vmatpush.msra.mxu0 %v105
    %v107 = vand.u32 %v24, 4294901760
    %v108 = vsub.f32 %v24, %v107
    %v109 = vand.u32 %v108, 4294901760
    %v110 = vsub.f32 %v108, %v109
    %v111 = vand.u32 %v110, 4294901760
    %112 = vmatpush.msra.mxu0 %v111
    %v113 = vand.u32 %v23, 4294901760
    %v114 = vsub.f32 %v23, %v113
    %v115 = vand.u32 %v114, 4294901760
    %v116 = vsub.f32 %v114, %v115
    %v117 = vand.u32 %v116, 4294901760
    %118 = vmatpush.msra.mxu0 %v117
    %v119 = vand.u32 %v22, 4294901760
    %v120 = vsub.f32 %v22, %v119
    %v121 = vand.u32 %v120, 4294901760
    %v122 = vsub.f32 %v120, %v121
    %v123 = vand.u32 %v122, 4294901760
    %124 = vmatpush.msra.mxu0 %v123
    %v125 = vand.u32 %v21, 4294901760
    %v126 = vsub.f32 %v21, %v125
    %v127 = vand.u32 %v126, 4294901760
    %v128 = vsub.f32 %v126, %v127
    %v129 = vand.u32 %v128, 4294901760
    %130 = vmatpush.msra.mxu0 %v129
    %v131 = vand.u32 %v20, 4294901760
    %v132 = vsub.f32 %v20, %v131
    %v133 = vand.u32 %v132, 4294901760
    %v134 = vsub.f32 %v132, %v133
    %v135 = vand.u32 %v134, 4294901760
    %136 = vmatpush.msra.mxu0 %v135
    %v137 = vand.u32 %v19, 4294901760
    %v138 = vsub.f32 %v19, %v137
    %v139 = vand.u32 %v138, 4294901760
    %v140 = vsub.f32 %v138, %v139
    %v141 = vand.u32 %v140, 4294901760
    %142 = vmatpush.msra.mxu0 %v141
    %v143 = vand.u32 %v18, 4294901760
    %v144 = vsub.f32 %v18, %v143
    %v145 = vand.u32 %v144, 4294901760
    %v146 = vsub.f32 %v144, %v145
    %v147 = vand.u32 %v146, 4294901760
    %148 = vmatpush.msra.mxu0 %v147
    %v149 = vand.u32 %v17, 4294901760
    %v150 = vsub.f32 %v17, %v149
    %v151 = vand.u32 %v150, 4294901760
    %v152 = vsub.f32 %v150, %v151
    %v153 = vand.u32 %v152, 4294901760
    %154 = vmatpush.msra.mxu0 %v153
    %v155 = vand.u32 %v16, 4294901760
    %v156 = vsub.f32 %v16, %v155
    %v157 = vand.u32 %v156, 4294901760
    %v158 = vsub.f32 %v156, %v157
    %v159 = vand.u32 %v158, 4294901760
    %160 = vmatpush.msra.mxu0 %v159
    %v161 = vand.u32 %v15, 4294901760
    %v162 = vsub.f32 %v15, %v161
    %v163 = vand.u32 %v162, 4294901760
    %v164 = vsub.f32 %v162, %v163
    %v165 = vand.u32 %v164, 4294901760
    %166 = vmatpush.msra.mxu0 %v165
    %v167 = vand.u32 %v14, 4294901760
    %v168 = vsub.f32 %v14, %v167
    %v169 = vand.u32 %v168, 4294901760
    %v170 = vsub.f32 %v168, %v169
    %v171 = vand.u32 %v170, 4294901760
    %172 = vmatpush.msra.mxu0 %v171
    %v173 = vand.u32 %v13, 4294901760
    %v174 = vsub.f32 %v13, %v173
    %v175 = vand.u32 %v174, 4294901760
    %v176 = vsub.f32 %v174, %v175
    %v177 = vand.u32 %v176, 4294901760
    %178 = vmatpush.msra.mxu0 %v177
    %v179 = vand.u32 %v12, 4294901760
    %v180 = vsub.f32 %v12, %v179
    %v181 = vand.u32 %v180, 4294901760
    %v182 = vsub.f32 %v180, %v181
    %v183 = vand.u32 %v182, 4294901760
    %184 = vmatpush.msra.mxu0 %v183
    %185 = vmatmul.f32.gmra.mxu0 %v40
    %v186 = vpop.f32.mrf.mxu0
    %v187 = vadd.f32 %v80, %v186
    %188 = vmatmul.f32.gmra.mxu0 %v41
    %v189 = vpop.f32.mrf.mxu0
    %v190 = vadd.f32 %v87, %v189
    %191 = vdwg.mxu0
    %v192 = vand.u32 %v27, 4294901760
    %v193 = vsub.f32 %v27, %v192
    %194 = vmatpush.msra.mxu0 %v193
    %v195 = vand.u32 %v26, 4294901760
    %v196 = vsub.f32 %v26, %v195
    %197 = vmatpush.msra.mxu0 %v196
    %v198 = vand.u32 %v25, 4294901760
    %v199 = vsub.f32 %v25, %v198
    %200 = vmatpush.msra.mxu0 %v199
    %v201 = vand.u32 %v24, 4294901760
    %v202 = vsub.f32 %v24, %v201
    %203 = vmatpush.msra.mxu0 %v202
    %v204 = vand.u32 %v23, 4294901760
    %v205 = vsub.f32 %v23, %v204
    %206 = vmatpush.msra.mxu0 %v205
    %v207 = vand.u32 %v22, 4294901760
    %v208 = vsub.f32 %v22, %v207
    %209 = vmatpush.msra.mxu0 %v208
    %v210 = vand.u32 %v21, 4294901760
    %v211 = vsub.f32 %v21, %v210
    %212 = vmatpush.msra.mxu0 %v211
    %v213 = vand.u32 %v20, 4294901760
    %v214 = vsub.f32 %v20, %v213
    %215 = vmatpush.msra.mxu0 %v214
    %v216 = vand.u32 %v19, 4294901760
    %v217 = vsub.f32 %v19, %v216
    %218 = vmatpush.msra.mxu0 %v217
    %v219 = vand.u32 %v18, 4294901760
    %v220 = vsub.f32 %v18, %v219
    %221 = vmatpush.msra.mxu0 %v220
    %v222 = vand.u32 %v17, 4294901760
    %v223 = vsub.f32 %v17, %v222
    %224 = vmatpush.msra.mxu0 %v223
    %v225 = vand.u32 %v16, 4294901760
    %v226 = vsub.f32 %v16, %v225
    %227 = vmatpush.msra.mxu0 %v226
    %v228 = vand.u32 %v15, 4294901760
    %v229 = vsub.f32 %v15, %v228
    %230 = vmatpush.msra.mxu0 %v229
    %v231 = vand.u32 %v14, 4294901760
    %v232 = vsub.f32 %v14, %v231
    %233 = vmatpush.msra.mxu0 %v232
    %v234 = vand.u32 %v13, 4294901760
    %v235 = vsub.f32 %v13, %v234
    %236 = vmatpush.msra.mxu0 %v235
    %v237 = vand.u32 %v12, 4294901760
    %v238 = vsub.f32 %v12, %v237
    %239 = vmatpush.msra.mxu0 %v238
    %v240 = vsub.f32 %v40, %v40
    %241 = vmatmul.f32.gmra.mxu0 %v240
    %v242 = vpop.f32.mrf.mxu0
    %v243 = vadd.f32 %v187, %v242
    %v244 = vsub.f32 %v41, %v41
    %245 = vmatmul.f32.gmra.mxu0 %v244
    %v246 = vpop.f32.mrf.mxu0
    %v247 = vadd.f32 %v190, %v246
    %248 = vdwg.mxu0
    %v249 = vand.u32 %v27, 4294901760
    %250 = vmatpush.msra.mxu0 %v249
    %v251 = vand.u32 %v26, 4294901760
    %252 = vmatpush.msra.mxu0 %v251
    %v253 = vand.u32 %v25, 4294901760
    %254 = vmatpush.msra.mxu0 %v253
    %v255 = vand.u32 %v24, 4294901760
    %256 = vmatpush.msra.mxu0 %v255
    %v257 = vand.u32 %v23, 4294901760
    %258 = vmatpush.msra.mxu0 %v257
    %v259 = vand.u32 %v22, 4294901760
    %260 = vmatpush.msra.mxu0 %v259
    %v261 = vand.u32 %v21, 4294901760
    %262 = vmatpush.msra.mxu0 %v261
    %v263 = vand.u32 %v20, 4294901760
    %264 = vmatpush.msra.mxu0 %v263
    %v265 = vand.u32 %v19, 4294901760
    %266 = vmatpush.msra.mxu0 %v265
    %v267 = vand.u32 %v18, 4294901760
    %268 = vmatpush.msra.mxu0 %v267
    %v269 = vand.u32 %v17, 4294901760
    %270 = vmatpush.msra.mxu0 %v269
    %v271 = vand.u32 %v16, 4294901760
    %272 = vmatpush.msra.mxu0 %v271
    %v273 = vand.u32 %v15, 4294901760
    %274 = vmatpush.msra.mxu0 %v273
    %v275 = vand.u32 %v14, 4294901760
    %276 = vmatpush.msra.mxu0 %v275
    %v277 = vand.u32 %v13, 4294901760
    %278 = vmatpush.msra.mxu0 %v277
    %v279 = vand.u32 %v12, 4294901760
    %280 = vmatpush.msra.mxu0 %v279
    %v281 = vsub.f32 %v40, %v40
    %v282 = vand.u32 %v281, 4294901760
    %283 = vmatmul.f32.gmra.mxu0 %v282
    %v284 = vpop.f32.mrf.mxu0
    %v285 = vadd.f32 %v243, %v284
    %v286 = vsub.f32 %v41, %v41
    %v287 = vand.u32 %v286, 4294901760
    %288 = vmatmul.f32.gmra.mxu0 %v287
    %v289 = vpop.f32.mrf.mxu0
    %v290 = vadd.f32 %v247, %v289
    %291 = vdwg.mxu0
    %v292 = vand.u32 %v27, 4294901760
    %v293 = vsub.f32 %v27, %v292
    %v294 = vand.u32 %v293, 4294901760
    %295 = vmatpush.msra.mxu0 %v294
    %v296 = vand.u32 %v26, 4294901760
    %v297 = vsub.f32 %v26, %v296
    %v298 = vand.u32 %v297, 4294901760
    %299 = vmatpush.msra.mxu0 %v298
    %v300 = vand.u32 %v25, 4294901760
    %v301 = vsub.f32 %v25, %v300
    %v302 = vand.u32 %v301, 4294901760
    %303 = vmatpush.msra.mxu0 %v302
    %v304 = vand.u32 %v24, 4294901760
    %v305 = vsub.f32 %v24, %v304
    %v306 = vand.u32 %v305, 4294901760
    %307 = vmatpush.msra.mxu0 %v306
    %v308 = vand.u32 %v23, 4294901760
    %v309 = vsub.f32 %v23, %v308
    %v310 = vand.u32 %v309, 4294901760
    %311 = vmatpush.msra.mxu0 %v310
    %v312 = vand.u32 %v22, 4294901760
    %v313 = vsub.f32 %v22, %v312
    %v314 = vand.u32 %v313, 4294901760
    %315 = vmatpush.msra.mxu0 %v314
    %v316 = vand.u32 %v21, 4294901760
    %v317 = vsub.f32 %v21, %v316
    %v318 = vand.u32 %v317, 4294901760
    %319 = vmatpush.msra.mxu0 %v318
    %v320 = vand.u32 %v20, 4294901760
    %v321 = vsub.f32 %v20, %v320
    %v322 = vand.u32 %v321, 4294901760
    %323 = vmatpush.msra.mxu0 %v322
    %v324 = vand.u32 %v19, 4294901760
    %v325 = vsub.f32 %v19, %v324
    %v326 = vand.u32 %v325, 4294901760
    %327 = vmatpush.msra.mxu0 %v326
    %v328 = vand.u32 %v18, 4294901760
    %v329 = vsub.f32 %v18, %v328
    %v330 = vand.u32 %v329, 4294901760
    %331 = vmatpush.msra.mxu0 %v330
    %v332 = vand.u32 %v17, 4294901760
    %v333 = vsub.f32 %v17, %v332
    %v334 = vand.u32 %v333, 4294901760
    %335 = vmatpush.msra.mxu0 %v334
    %v336 = vand.u32 %v16, 4294901760
    %v337 = vsub.f32 %v16, %v336
    %v338 = vand.u32 %v337, 4294901760
    %339 = vmatpush.msra.mxu0 %v338
    %v340 = vand.u32 %v15, 4294901760
    %v341 = vsub.f32 %v15, %v340
    %v342 = vand.u32 %v341, 4294901760
    %343 = vmatpush.msra.mxu0 %v342
    %v344 = vand.u32 %v14, 4294901760
    %v345 = vsub.f32 %v14, %v344
    %v346 = vand.u32 %v345, 4294901760
    %347 = vmatpush.msra.mxu0 %v346
    %v348 = vand.u32 %v13, 4294901760
    %v349 = vsub.f32 %v13, %v348
    %v350 = vand.u32 %v349, 4294901760
    %351 = vmatpush.msra.mxu0 %v350
    %v352 = vand.u32 %v12, 4294901760
    %v353 = vsub.f32 %v12, %v352
    %v354 = vand.u32 %v353, 4294901760
    %355 = vmatpush.msra.mxu0 %v354
    %356 = vmatmul.f32.gmra.mxu0 %v40
    %v357 = vpop.f32.mrf.mxu0
    %v358 = vadd.f32 %v285, %v357
    %359 = vmatmul.f32.gmra.mxu0 %v41
    %v360 = vpop.f32.mrf.mxu0
    %v361 = vadd.f32 %v290, %v360
    %362 = vdwg.mxu0
    %v363 = vand.u32 %v27, 4294901760
    %364 = vmatpush.msra.mxu0 %v363
    %v365 = vand.u32 %v26, 4294901760
    %366 = vmatpush.msra.mxu0 %v365
    %v367 = vand.u32 %v25, 4294901760
    %368 = vmatpush.msra.mxu0 %v367
    %v369 = vand.u32 %v24, 4294901760
    %370 = vmatpush.msra.mxu0 %v369
    %v371 = vand.u32 %v23, 4294901760
    %372 = vmatpush.msra.mxu0 %v371
    %v373 = vand.u32 %v22, 4294901760
    %374 = vmatpush.msra.mxu0 %v373
    %v375 = vand.u32 %v21, 4294901760
    %376 = vmatpush.msra.mxu0 %v375
    %v377 = vand.u32 %v20, 4294901760
    %378 = vmatpush.msra.mxu0 %v377
    %v379 = vand.u32 %v19, 4294901760
    %380 = vmatpush.msra.mxu0 %v379
    %v381 = vand.u32 %v18, 4294901760
    %382 = vmatpush.msra.mxu0 %v381
    %v383 = vand.u32 %v17, 4294901760
    %384 = vmatpush.msra.mxu0 %v383
    %v385 = vand.u32 %v16, 4294901760
    %386 = vmatpush.msra.mxu0 %v385
    %v387 = vand.u32 %v15, 4294901760
    %388 = vmatpush.msra.mxu0 %v387
    %v389 = vand.u32 %v14, 4294901760
    %390 = vmatpush.msra.mxu0 %v389
    %v391 = vand.u32 %v13, 4294901760
    %392 = vmatpush.msra.mxu0 %v391
    %v393 = vand.u32 %v12, 4294901760
    %394 = vmatpush.msra.mxu0 %v393
    %395 = vmatmul.f32.gmra.mxu0 %v40
    %v396 = vpop.f32.mrf.mxu0
    %v397 = vadd.f32 %v358, %v396
    %398 = vmatmul.f32.gmra.mxu0 %v41
    %v399 = vpop.f32.mrf.mxu0
    %v400 = vadd.f32 %v361, %v399
    %401 = vdwg.mxu0
    %402 = vset.pattern.permute.xlu0 1
    %403 = vperm.xlu0 %402, %v28
    %v404 = vpop.permute.xlu0 %403
    %405 = vset.pattern.permute.xlu0 1
    %406 = vperm.xlu0 %405, %v29
    %v407 = vpop.permute.xlu0 %406
    %vm408 = vcmp.eq.s32.totalorder %v31, %v404
    %vm409 = vcmp.eq.s32.totalorder %v31, %v407
    %v410 = vsel %vm408, 1.0, 0.0
    %v411 = vsel %vm409, 1.0, 0.0
    %v412 = vand.u32 %v27, 4294901760
    %413 = vmatpush.msra.mxu0 %v412
    %v414 = vand.u32 %v26, 4294901760
    %415 = vmatpush.msra.mxu0 %v414
    %v416 = vand.u32 %v25, 4294901760
    %417 = vmatpush.msra.mxu0 %v416
    %v418 = vand.u32 %v24, 4294901760
    %419 = vmatpush.msra.mxu0 %v418
    %v420 = vand.u32 %v23, 4294901760
    %421 = vmatpush.msra.mxu0 %v420
    %v422 = vand.u32 %v22, 4294901760
    %423 = vmatpush.msra.mxu0 %v422
    %v424 = vand.u32 %v21, 4294901760
    %425 = vmatpush.msra.mxu0 %v424
    %v426 = vand.u32 %v20, 4294901760
    %427 = vmatpush.msra.mxu0 %v426
    %v428 = vand.u32 %v19, 4294901760
    %429 = vmatpush.msra.mxu0 %v428
    %v430 = vand.u32 %v18, 4294901760
    %431 = vmatpush.msra.mxu0 %v430
    %v432 = vand.u32 %v17, 4294901760
    %433 = vmatpush.msra.mxu0 %v432
    %v434 = vand.u32 %v16, 4294901760
    %435 = vmatpush.msra.mxu0 %v434
    %v436 = vand.u32 %v15, 4294901760
    %437 = vmatpush.msra.mxu0 %v436
    %v438 = vand.u32 %v14, 4294901760
    %439 = vmatpush.msra.mxu0 %v438
    %v440 = vand.u32 %v13, 4294901760
    %441 = vmatpush.msra.mxu0 %v440
    %v442 = vand.u32 %v12, 4294901760
    %443 = vmatpush.msra.mxu0 %v442
    %v444 = vsub.f32 %v410, %v410
    %v445 = vand.u32 %v444, 4294901760
    %v446 = vsub.f32 %v444, %v445
    %v447 = vand.u32 %v446, 4294901760
    %448 = vmatmul.f32.gmra.mxu0 %v447
    %v449 = vpop.f32.mrf.mxu0
    %v450 = vadd.f32 0.0, %v449
    %v451 = vsub.f32 %v411, %v411
    %v452 = vand.u32 %v451, 4294901760
    %v453 = vsub.f32 %v451, %v452
    %v454 = vand.u32 %v453, 4294901760
    %455 = vmatmul.f32.gmra.mxu0 %v454
    %v456 = vpop.f32.mrf.mxu0
    %v457 = vadd.f32 0.0, %v456
    %458 = vdwg.mxu0
    %v459 = vand.u32 %v27, 4294901760
    %v460 = vsub.f32 %v27, %v459
    %v461 = vand.u32 %v460, 4294901760
    %v462 = vsub.f32 %v460, %v461
    %v463 = vand.u32 %v462, 4294901760
    %464 = vmatpush.msra.mxu0 %v463
    %v465 = vand.u32 %v26, 4294901760
    %v466 = vsub.f32 %v26, %v465
    %v467 = vand.u32 %v466, 4294901760
    %v468 = vsub.f32 %v466, %v467
    %v469 = vand.u32 %v468, 4294901760
    %470 = vmatpush.msra.mxu0 %v469
    %v471 = vand.u32 %v25, 4294901760
    %v472 = vsub.f32 %v25, %v471
    %v473 = vand.u32 %v472, 4294901760
    %v474 = vsub.f32 %v472, %v473
    %v475 = vand.u32 %v474, 4294901760
    %476 = vmatpush.msra.mxu0 %v475
    %v477 = vand.u32 %v24, 4294901760
    %v478 = vsub.f32 %v24, %v477
    %v479 = vand.u32 %v478, 4294901760
    %v480 = vsub.f32 %v478, %v479
    %v481 = vand.u32 %v480, 4294901760
    %482 = vmatpush.msra.mxu0 %v481
    %v483 = vand.u32 %v23, 4294901760
    %v484 = vsub.f32 %v23, %v483
    %v485 = vand.u32 %v484, 4294901760
    %v486 = vsub.f32 %v484, %v485
    %v487 = vand.u32 %v486, 4294901760
    %488 = vmatpush.msra.mxu0 %v487
    %v489 = vand.u32 %v22, 4294901760
    %v490 = vsub.f32 %v22, %v489
    %v491 = vand.u32 %v490, 4294901760
    %v492 = vsub.f32 %v490, %v491
    %v493 = vand.u32 %v492, 4294901760
    %494 = vmatpush.msra.mxu0 %v493
    %v495 = vand.u32 %v21, 4294901760
    %v496 = vsub.f32 %v21, %v495
    %v497 = vand.u32 %v496, 4294901760
    %v498 = vsub.f32 %v496, %v497
    %v499 = vand.u32 %v498, 4294901760
    %500 = vmatpush.msra.mxu0 %v499
    %v501 = vand.u32 %v20, 4294901760
    %v502 = vsub.f32 %v20, %v501
    %v503 = vand.u32 %v502, 4294901760
    %v504 = vsub.f32 %v502, %v503
    %v505 = vand.u32 %v504, 4294901760
    %506 = vmatpush.msra.mxu0 %v505
    %v507 = vand.u32 %v19, 4294901760
    %v508 = vsub.f32 %v19, %v507
    %v509 = vand.u32 %v508, 4294901760
    %v510 = vsub.f32 %v508, %v509
    %v511 = vand.u32 %v510, 4294901760
    %512 = vmatpush.msra.mxu0 %v511
    %v513 = vand.u32 %v18, 4294901760
    %v514 = vsub.f32 %v18, %v513
    %v515 = vand.u32 %v514, 4294901760
    %v516 = vsub.f32 %v514, %v515
    %v517 = vand.u32 %v516, 4294901760
    %518 = vmatpush.msra.mxu0 %v517
    %v519 = vand.u32 %v17, 4294901760
    %v520 = vsub.f32 %v17, %v519
    %v521 = vand.u32 %v520, 4294901760
    %v522 = vsub.f32 %v520, %v521
    %v523 = vand.u32 %v522, 4294901760
    %524 = vmatpush.msra.mxu0 %v523
    %v525 = vand.u32 %v16, 4294901760
    %v526 = vsub.f32 %v16, %v525
    %v527 = vand.u32 %v526, 4294901760
    %v528 = vsub.f32 %v526, %v527
    %v529 = vand.u32 %v528, 4294901760
    %530 = vmatpush.msra.mxu0 %v529
    %v531 = vand.u32 %v15, 4294901760
    %v532 = vsub.f32 %v15, %v531
    %v533 = vand.u32 %v532, 4294901760
    %v534 = vsub.f32 %v532, %v533
    %v535 = vand.u32 %v534, 4294901760
    %536 = vmatpush.msra.mxu0 %v535
    %v537 = vand.u32 %v14, 4294901760
    %v538 = vsub.f32 %v14, %v537
    %v539 = vand.u32 %v538, 4294901760
    %v540 = vsub.f32 %v538, %v539
    %v541 = vand.u32 %v540, 4294901760
    %542 = vmatpush.msra.mxu0 %v541
    %v543 = vand.u32 %v13, 4294901760
    %v544 = vsub.f32 %v13, %v543
    %v545 = vand.u32 %v544, 4294901760
    %v546 = vsub.f32 %v544, %v545
    %v547 = vand.u32 %v546, 4294901760
    %548 = vmatpush.msra.mxu0 %v547
    %v549 = vand.u32 %v12, 4294901760
    %v550 = vsub.f32 %v12, %v549
    %v551 = vand.u32 %v550, 4294901760
    %v552 = vsub.f32 %v550, %v551
    %v553 = vand.u32 %v552, 4294901760
    %554 = vmatpush.msra.mxu0 %v553
    %555 = vmatmul.f32.gmra.mxu0 %v410
    %v556 = vpop.f32.mrf.mxu0
    %v557 = vadd.f32 %v450, %v556
    %558 = vmatmul.f32.gmra.mxu0 %v411
    %v559 = vpop.f32.mrf.mxu0
    %v560 = vadd.f32 %v457, %v559
    %561 = vdwg.mxu0
    %v562 = vand.u32 %v27, 4294901760
    %v563 = vsub.f32 %v27, %v562
    %564 = vmatpush.msra.mxu0 %v563
    %v565 = vand.u32 %v26, 4294901760
    %v566 = vsub.f32 %v26, %v565
    %567 = vmatpush.msra.mxu0 %v566
    %v568 = vand.u32 %v25, 4294901760
    %v569 = vsub.f32 %v25, %v568
    %570 = vmatpush.msra.mxu0 %v569
    %v571 = vand.u32 %v24, 4294901760
    %v572 = vsub.f32 %v24, %v571
    %573 = vmatpush.msra.mxu0 %v572
    %v574 = vand.u32 %v23, 4294901760
    %v575 = vsub.f32 %v23, %v574
    %576 = vmatpush.msra.mxu0 %v575
    %v577 = vand.u32 %v22, 4294901760
    %v578 = vsub.f32 %v22, %v577
    %579 = vmatpush.msra.mxu0 %v578
    %v580 = vand.u32 %v21, 4294901760
    %v581 = vsub.f32 %v21, %v580
    %582 = vmatpush.msra.mxu0 %v581
    %v583 = vand.u32 %v20, 4294901760
    %v584 = vsub.f32 %v20, %v583
    %585 = vmatpush.msra.mxu0 %v584
    %v586 = vand.u32 %v19, 4294901760
    %v587 = vsub.f32 %v19, %v586
    %588 = vmatpush.msra.mxu0 %v587
    %v589 = vand.u32 %v18, 4294901760
    %v590 = vsub.f32 %v18, %v589
    %591 = vmatpush.msra.mxu0 %v590
    %v592 = vand.u32 %v17, 4294901760
    %v593 = vsub.f32 %v17, %v592
    %594 = vmatpush.msra.mxu0 %v593
    %v595 = vand.u32 %v16, 4294901760
    %v596 = vsub.f32 %v16, %v595
    %597 = vmatpush.msra.mxu0 %v596
    %v598 = vand.u32 %v15, 4294901760
    %v599 = vsub.f32 %v15, %v598
    %600 = vmatpush.msra.mxu0 %v599
    %v601 = vand.u32 %v14, 4294901760
    %v602 = vsub.f32 %v14, %v601
    %603 = vmatpush.msra.mxu0 %v602
    %v604 = vand.u32 %v13, 4294901760
    %v605 = vsub.f32 %v13, %v604
    %606 = vmatpush.msra.mxu0 %v605
    %v607 = vand.u32 %v12, 4294901760
    %v608 = vsub.f32 %v12, %v607
    %609 = vmatpush.msra.mxu0 %v608
    %v610 = vsub.f32 %v410, %v410
    %611 = vmatmul.f32.gmra.mxu0 %v610
    %v612 = vpop.f32.mrf.mxu0
    %v613 = vadd.f32 %v557, %v612
    %v614 = vsub.f32 %v411, %v411
    %615 = vmatmul.f32.gmra.mxu0 %v614
    %v616 = vpop.f32.mrf.mxu0
    %v617 = vadd.f32 %v560, %v616
    %618 = vdwg.mxu0
    %v619 = vand.u32 %v27, 4294901760
    %620 = vmatpush.msra.mxu0 %v619
    %v621 = vand.u32 %v26, 4294901760
    %622 = vmatpush.msra.mxu0 %v621
    %v623 = vand.u32 %v25, 4294901760
    %624 = vmatpush.msra.mxu0 %v623
    %v625 = vand.u32 %v24, 4294901760
    %626 = vmatpush.msra.mxu0 %v625
    %v627 = vand.u32 %v23, 4294901760
    %628 = vmatpush.msra.mxu0 %v627
    %v629 = vand.u32 %v22, 4294901760
    %630 = vmatpush.msra.mxu0 %v629
    %v631 = vand.u32 %v21, 4294901760
    %632 = vmatpush.msra.mxu0 %v631
    %v633 = vand.u32 %v20, 4294901760
    %634 = vmatpush.msra.mxu0 %v633
    %v635 = vand.u32 %v19, 4294901760
    %636 = vmatpush.msra.mxu0 %v635
    %v637 = vand.u32 %v18, 4294901760
    %638 = vmatpush.msra.mxu0 %v637
    %v639 = vand.u32 %v17, 4294901760
    %640 = vmatpush.msra.mxu0 %v639
    %v641 = vand.u32 %v16, 4294901760
    %642 = vmatpush.msra.mxu0 %v641
    %v643 = vand.u32 %v15, 4294901760
    %644 = vmatpush.msra.mxu0 %v643
    %v645 = vand.u32 %v14, 4294901760
    %646 = vmatpush.msra.mxu0 %v645
    %v647 = vand.u32 %v13, 4294901760
    %648 = vmatpush.msra.mxu0 %v647
    %v649 = vand.u32 %v12, 4294901760
    %650 = vmatpush.msra.mxu0 %v649
    %v651 = vsub.f32 %v410, %v410
    %v652 = vand.u32 %v651, 4294901760
    %653 = vmatmul.f32.gmra.mxu0 %v652
    %v654 = vpop.f32.mrf.mxu0
    %v655 = vadd.f32 %v613, %v654
    %v656 = vsub.f32 %v411, %v411
    %v657 = vand.u32 %v656, 4294901760
    %658 = vmatmul.f32.gmra.mxu0 %v657
    %v659 = vpop.f32.mrf.mxu0
    %v660 = vadd.f32 %v617, %v659
    %661 = vdwg.mxu0
    %v662 = vand.u32 %v27, 4294901760
    %v663 = vsub.f32 %v27, %v662
    %v664 = vand.u32 %v663, 4294901760
    %665 = vmatpush.msra.mxu0 %v664
    %v666 = vand.u32 %v26, 4294901760
    %v667 = vsub.f32 %v26, %v666
    %v668 = vand.u32 %v667, 4294901760
    %669 = vmatpush.msra.mxu0 %v668
    %v670 = vand.u32 %v25, 4294901760
    %v671 = vsub.f32 %v25, %v670
    %v672 = vand.u32 %v671, 4294901760
    %673 = vmatpush.msra.mxu0 %v672
    %v674 = vand.u32 %v24, 4294901760
    %v675 = vsub.f32 %v24, %v674
    %v676 = vand.u32 %v675, 4294901760
    %677 = vmatpush.msra.mxu0 %v676
    %v678 = vand.u32 %v23, 4294901760
    %v679 = vsub.f32 %v23, %v678
    %v680 = vand.u32 %v679, 4294901760
    %681 = vmatpush.msra.mxu0 %v680
    %v682 = vand.u32 %v22, 4294901760
    %v683 = vsub.f32 %v22, %v682
    %v684 = vand.u32 %v683, 4294901760
    %685 = vmatpush.msra.mxu0 %v684
    %v686 = vand.u32 %v21, 4294901760
    %v687 = vsub.f32 %v21, %v686
    %v688 = vand.u32 %v687, 4294901760
    %689 = vmatpush.msra.mxu0 %v688
    %v690 = vand.u32 %v20, 4294901760
    %v691 = vsub.f32 %v20, %v690
    %v692 = vand.u32 %v691, 4294901760
    %693 = vmatpush.msra.mxu0 %v692
    %v694 = vand.u32 %v19, 4294901760
    %v695 = vsub.f32 %v19, %v694
    %v696 = vand.u32 %v695, 4294901760
    %697 = vmatpush.msra.mxu0 %v696
    %v698 = vand.u32 %v18, 4294901760
    %v699 = vsub.f32 %v18, %v698
    %v700 = vand.u32 %v699, 4294901760
    %701 = vmatpush.msra.mxu0 %v700
    %v702 = vand.u32 %v17, 4294901760
    %v703 = vsub.f32 %v17, %v702
    %v704 = vand.u32 %v703, 4294901760
    %705 = vmatpush.msra.mxu0 %v704
    %v706 = vand.u32 %v16, 4294901760
    %v707 = vsub.f32 %v16, %v706
    %v708 = vand.u32 %v707, 4294901760
    %709 = vmatpush.msra.mxu0 %v708
    %v710 = vand.u32 %v15, 4294901760
    %v711 = vsub.f32 %v15, %v710
    %v712 = vand.u32 %v711, 4294901760
    %713 = vmatpush.msra.mxu0 %v712
    %v714 = vand.u32 %v14, 4294901760
    %v715 = vsub.f32 %v14, %v714
    %v716 = vand.u32 %v715, 4294901760
    %717 = vmatpush.msra.mxu0 %v716
    %v718 = vand.u32 %v13, 4294901760
    %v719 = vsub.f32 %v13, %v718
    %v720 = vand.u32 %v719, 4294901760
    %721 = vmatpush.msra.mxu0 %v720
    %v722 = vand.u32 %v12, 4294901760
    %v723 = vsub.f32 %v12, %v722
    %v724 = vand.u32 %v723, 4294901760
    %725 = vmatpush.msra.mxu0 %v724
    %726 = vmatmul.f32.gmra.mxu0 %v410
    %v727 = vpop.f32.mrf.mxu0
    %v728 = vadd.f32 %v655, %v727
    %729 = vmatmul.f32.gmra.mxu0 %v411
    %v730 = vpop.f32.mrf.mxu0
    %v731 = vadd.f32 %v660, %v730
    %732 = vdwg.mxu0
    %v733 = vand.u32 %v27, 4294901760
    %734 = vmatpush.msra.mxu0 %v733
    %v735 = vand.u32 %v26, 4294901760
    %736 = vmatpush.msra.mxu0 %v735
    %v737 = vand.u32 %v25, 4294901760
    %738 = vmatpush.msra.mxu0 %v737
    %v739 = vand.u32 %v24, 4294901760
    %740 = vmatpush.msra.mxu0 %v739
    %v741 = vand.u32 %v23, 4294901760
    %742 = vmatpush.msra.mxu0 %v741
    %v743 = vand.u32 %v22, 4294901760
    %744 = vmatpush.msra.mxu0 %v743
    %v745 = vand.u32 %v21, 4294901760
    %746 = vmatpush.msra.mxu0 %v745
    %v747 = vand.u32 %v20, 4294901760
    %748 = vmatpush.msra.mxu0 %v747
    %v749 = vand.u32 %v19, 4294901760
    %750 = vmatpush.msra.mxu0 %v749
    %v751 = vand.u32 %v18, 4294901760
    %752 = vmatpush.msra.mxu0 %v751
    %v753 = vand.u32 %v17, 4294901760
    %754 = vmatpush.msra.mxu0 %v753
    %v755 = vand.u32 %v16, 4294901760
    %756 = vmatpush.msra.mxu0 %v755
    %v757 = vand.u32 %v15, 4294901760
    %758 = vmatpush.msra.mxu0 %v757
    %v759 = vand.u32 %v14, 4294901760
    %760 = vmatpush.msra.mxu0 %v759
    %v761 = vand.u32 %v13, 4294901760
    %762 = vmatpush.msra.mxu0 %v761
    %v763 = vand.u32 %v12, 4294901760
    %764 = vmatpush.msra.mxu0 %v763
    %765 = vmatmul.f32.gmra.mxu0 %v410
    %v766 = vpop.f32.mrf.mxu0
    %v767 = vadd.f32 %v728, %v766
    %768 = vmatmul.f32.gmra.mxu0 %v411
    %v769 = vpop.f32.mrf.mxu0
    %v770 = vadd.f32 %v731, %v769
    %771 = vdwg.mxu0
    %772 = vset.pattern.permute.xlu0 2
    %773 = vperm.xlu0 %772, %v28
    %v774 = vpop.permute.xlu0 %773
    %775 = vset.pattern.permute.xlu0 2
    %776 = vperm.xlu0 %775, %v29
    %v777 = vpop.permute.xlu0 %776
    %vm778 = vcmp.eq.s32.totalorder %v31, %v774
    %vm779 = vcmp.eq.s32.totalorder %v31, %v777
    %v780 = vsel %vm778, 1.0, 0.0
    %v781 = vsel %vm779, 1.0, 0.0
    %v782 = vand.u32 %v27, 4294901760
    %783 = vmatpush.msra.mxu0 %v782
    %v784 = vand.u32 %v26, 4294901760
    %785 = vmatpush.msra.mxu0 %v784
    %v786 = vand.u32 %v25, 4294901760
    %787 = vmatpush.msra.mxu0 %v786
    %v788 = vand.u32 %v24, 4294901760
    %789 = vmatpush.msra.mxu0 %v788
    %v790 = vand.u32 %v23, 4294901760
    %791 = vmatpush.msra.mxu0 %v790
    %v792 = vand.u32 %v22, 4294901760
    %793 = vmatpush.msra.mxu0 %v792
    %v794 = vand.u32 %v21, 4294901760
    %795 = vmatpush.msra.mxu0 %v794
    %v796 = vand.u32 %v20, 4294901760
    %797 = vmatpush.msra.mxu0 %v796
    %v798 = vand.u32 %v19, 4294901760
    %799 = vmatpush.msra.mxu0 %v798
    %v800 = vand.u32 %v18, 4294901760
    %801 = vmatpush.msra.mxu0 %v800
    %v802 = vand.u32 %v17, 4294901760
    %803 = vmatpush.msra.mxu0 %v802
    %v804 = vand.u32 %v16, 4294901760
    %805 = vmatpush.msra.mxu0 %v804
    %v806 = vand.u32 %v15, 4294901760
    %807 = vmatpush.msra.mxu0 %v806
    %v808 = vand.u32 %v14, 4294901760
    %809 = vmatpush.msra.mxu0 %v808
    %v810 = vand.u32 %v13, 4294901760
    %811 = vmatpush.msra.mxu0 %v810
    %v812 = vand.u32 %v12, 4294901760
    %813 = vmatpush.msra.mxu0 %v812
    %v814 = vsub.f32 %v780, %v780
    %v815 = vand.u32 %v814, 4294901760
    %v816 = vsub.f32 %v814, %v815
    %v817 = vand.u32 %v816, 4294901760
    %818 = vmatmul.f32.gmra.mxu0 %v817
    %v819 = vpop.f32.mrf.mxu0
    %v820 = vadd.f32 0.0, %v819
    %v821 = vsub.f32 %v781, %v781
    %v822 = vand.u32 %v821, 4294901760
    %v823 = vsub.f32 %v821, %v822
    %v824 = vand.u32 %v823, 4294901760
    %825 = vmatmul.f32.gmra.mxu0 %v824
    %v826 = vpop.f32.mrf.mxu0
    %v827 = vadd.f32 0.0, %v826
    %828 = vdwg.mxu0
    %v829 = vand.u32 %v27, 4294901760
    %v830 = vsub.f32 %v27, %v829
    %v831 = vand.u32 %v830, 4294901760
    %v832 = vsub.f32 %v830, %v831
    %v833 = vand.u32 %v832, 4294901760
    %834 = vmatpush.msra.mxu0 %v833
    %v835 = vand.u32 %v26, 4294901760
    %v836 = vsub.f32 %v26, %v835
    %v837 = vand.u32 %v836, 4294901760
    %v838 = vsub.f32 %v836, %v837
    %v839 = vand.u32 %v838, 4294901760
    %840 = vmatpush.msra.mxu0 %v839
    %v841 = vand.u32 %v25, 4294901760
    %v842 = vsub.f32 %v25, %v841
    %v843 = vand.u32 %v842, 4294901760
    %v844 = vsub.f32 %v842, %v843
    %v845 = vand.u32 %v844, 4294901760
    %846 = vmatpush.msra.mxu0 %v845
    %v847 = vand.u32 %v24, 4294901760
    %v848 = vsub.f32 %v24, %v847
    %v849 = vand.u32 %v848, 4294901760
    %v850 = vsub.f32 %v848, %v849
    %v851 = vand.u32 %v850, 4294901760
    %852 = vmatpush.msra.mxu0 %v851
    %v853 = vand.u32 %v23, 4294901760
    %v854 = vsub.f32 %v23, %v853
    %v855 = vand.u32 %v854, 4294901760
    %v856 = vsub.f32 %v854, %v855
    %v857 = vand.u32 %v856, 4294901760
    %858 = vmatpush.msra.mxu0 %v857
    %v859 = vand.u32 %v22, 4294901760
    %v860 = vsub.f32 %v22, %v859
    %v861 = vand.u32 %v860, 4294901760
    %v862 = vsub.f32 %v860, %v861
    %v863 = vand.u32 %v862, 4294901760
    %864 = vmatpush.msra.mxu0 %v863
    %v865 = vand.u32 %v21, 4294901760
    %v866 = vsub.f32 %v21, %v865
    %v867 = vand.u32 %v866, 4294901760
    %v868 = vsub.f32 %v866, %v867
    %v869 = vand.u32 %v868, 4294901760
    %870 = vmatpush.msra.mxu0 %v869
    %v871 = vand.u32 %v20, 4294901760
    %v872 = vsub.f32 %v20, %v871
    %v873 = vand.u32 %v872, 4294901760
    %v874 = vsub.f32 %v872, %v873
    %v875 = vand.u32 %v874, 4294901760
    %876 = vmatpush.msra.mxu0 %v875
    %v877 = vand.u32 %v19, 4294901760
    %v878 = vsub.f32 %v19, %v877
    %v879 = vand.u32 %v878, 4294901760
    %v880 = vsub.f32 %v878, %v879
    %v881 = vand.u32 %v880, 4294901760
    %882 = vmatpush.msra.mxu0 %v881
    %v883 = vand.u32 %v18, 4294901760
    %v884 = vsub.f32 %v18, %v883
    %v885 = vand.u32 %v884, 4294901760
    %v886 = vsub.f32 %v884, %v885
    %v887 = vand.u32 %v886, 4294901760
    %888 = vmatpush.msra.mxu0 %v887
    %v889 = vand.u32 %v17, 4294901760
    %v890 = vsub.f32 %v17, %v889
    %v891 = vand.u32 %v890, 4294901760
    %v892 = vsub.f32 %v890, %v891
    %v893 = vand.u32 %v892, 4294901760
    %894 = vmatpush.msra.mxu0 %v893
    %v895 = vand.u32 %v16, 4294901760
    %v896 = vsub.f32 %v16, %v895
    %v897 = vand.u32 %v896, 4294901760
    %v898 = vsub.f32 %v896, %v897
    %v899 = vand.u32 %v898, 4294901760
    %900 = vmatpush.msra.mxu0 %v899
    %v901 = vand.u32 %v15, 4294901760
    %v902 = vsub.f32 %v15, %v901
    %v903 = vand.u32 %v902, 4294901760
    %v904 = vsub.f32 %v902, %v903
    %v905 = vand.u32 %v904, 4294901760
    %906 = vmatpush.msra.mxu0 %v905
    %v907 = vand.u32 %v14, 4294901760
    %v908 = vsub.f32 %v14, %v907
    %v909 = vand.u32 %v908, 4294901760
    %v910 = vsub.f32 %v908, %v909
    %v911 = vand.u32 %v910, 4294901760
    %912 = vmatpush.msra.mxu0 %v911
    %v913 = vand.u32 %v13, 4294901760
    %v914 = vsub.f32 %v13, %v913
    %v915 = vand.u32 %v914, 4294901760
    %v916 = vsub.f32 %v914, %v915
    %v917 = vand.u32 %v916, 4294901760
    %918 = vmatpush.msra.mxu0 %v917
    %v919 = vand.u32 %v12, 4294901760
    %v920 = vsub.f32 %v12, %v919
    %v921 = vand.u32 %v920, 4294901760
    %v922 = vsub.f32 %v920, %v921
    %v923 = vand.u32 %v922, 4294901760
    %924 = vmatpush.msra.mxu0 %v923
    %925 = vmatmul.f32.gmra.mxu0 %v780
    %v926 = vpop.f32.mrf.mxu0
    %v927 = vadd.f32 %v820, %v926
    %928 = vmatmul.f32.gmra.mxu0 %v781
    %v929 = vpop.f32.mrf.mxu0
    %v930 = vadd.f32 %v827, %v929
    %931 = vdwg.mxu0
    %v932 = vand.u32 %v27, 4294901760
    %v933 = vsub.f32 %v27, %v932
    %934 = vmatpush.msra.mxu0 %v933
    %v935 = vand.u32 %v26, 4294901760
    %v936 = vsub.f32 %v26, %v935
    %937 = vmatpush.msra.mxu0 %v936
    %v938 = vand.u32 %v25, 4294901760
    %v939 = vsub.f32 %v25, %v938
    %940 = vmatpush.msra.mxu0 %v939
    %v941 = vand.u32 %v24, 4294901760
    %v942 = vsub.f32 %v24, %v941
    %943 = vmatpush.msra.mxu0 %v942
    %v944 = vand.u32 %v23, 4294901760
    %v945 = vsub.f32 %v23, %v944
    %946 = vmatpush.msra.mxu0 %v945
    %v947 = vand.u32 %v22, 4294901760
    %v948 = vsub.f32 %v22, %v947
    %949 = vmatpush.msra.mxu0 %v948
    %v950 = vand.u32 %v21, 4294901760
    %v951 = vsub.f32 %v21, %v950
    %952 = vmatpush.msra.mxu0 %v951
    %v953 = vand.u32 %v20, 4294901760
    %v954 = vsub.f32 %v20, %v953
    %955 = vmatpush.msra.mxu0 %v954
    %v956 = vand.u32 %v19, 4294901760
    %v957 = vsub.f32 %v19, %v956
    %958 = vmatpush.msra.mxu0 %v957
    %v959 = vand.u32 %v18, 4294901760
    %v960 = vsub.f32 %v18, %v959
    %961 = vmatpush.msra.mxu0 %v960
    %v962 = vand.u32 %v17, 4294901760
    %v963 = vsub.f32 %v17, %v962
    %964 = vmatpush.msra.mxu0 %v963
    %v965 = vand.u32 %v16, 4294901760
    %v966 = vsub.f32 %v16, %v965
    %967 = vmatpush.msra.mxu0 %v966
    %v968 = vand.u32 %v15, 4294901760
    %v969 = vsub.f32 %v15, %v968
    %970 = vmatpush.msra.mxu0 %v969
    %v971 = vand.u32 %v14, 4294901760
    %v972 = vsub.f32 %v14, %v971
    %973 = vmatpush.msra.mxu0 %v972
    %v974 = vand.u32 %v13, 4294901760
    %v975 = vsub.f32 %v13, %v974
    %976 = vmatpush.msra.mxu0 %v975
    %v977 = vand.u32 %v12, 4294901760
    %v978 = vsub.f32 %v12, %v977
    %979 = vmatpush.msra.mxu0 %v978
    %v980 = vsub.f32 %v780, %v780
    %981 = vmatmul.f32.gmra.mxu0 %v980
    %v982 = vpop.f32.mrf.mxu0
    %v983 = vadd.f32 %v927, %v982
    %v984 = vsub.f32 %v781, %v781
    %985 = vmatmul.f32.gmra.mxu0 %v984
    %v986 = vpop.f32.mrf.mxu0
    %v987 = vadd.f32 %v930, %v986
    %988 = vdwg.mxu0
    %v989 = vand.u32 %v27, 4294901760
    %990 = vmatpush.msra.mxu0 %v989
    %v991 = vand.u32 %v26, 4294901760
    %992 = vmatpush.msra.mxu0 %v991
    %v993 = vand.u32 %v25, 4294901760
    %994 = vmatpush.msra.mxu0 %v993
    %v995 = vand.u32 %v24, 4294901760
    %996 = vmatpush.msra.mxu0 %v995
    %v997 = vand.u32 %v23, 4294901760
    %998 = vmatpush.msra.mxu0 %v997
    %v999 = vand.u32 %v22, 4294901760
    %1000 = vmatpush.msra.mxu0 %v999
    %v1001 = vand.u32 %v21, 4294901760
    %1002 = vmatpush.msra.mxu0 %v1001
    %v1003 = vand.u32 %v20, 4294901760
    %1004 = vmatpush.msra.mxu0 %v1003
    %v1005 = vand.u32 %v19, 4294901760
    %1006 = vmatpush.msra.mxu0 %v1005
    %v1007 = vand.u32 %v18, 4294901760
    %1008 = vmatpush.msra.mxu0 %v1007
    %v1009 = vand.u32 %v17, 4294901760
    %1010 = vmatpush.msra.mxu0 %v1009
    %v1011 = vand.u32 %v16, 4294901760
    %1012 = vmatpush.msra.mxu0 %v1011
    %v1013 = vand.u32 %v15, 4294901760
    %1014 = vmatpush.msra.mxu0 %v1013
    %v1015 = vand.u32 %v14, 4294901760
    %1016 = vmatpush.msra.mxu0 %v1015
    %v1017 = vand.u32 %v13, 4294901760
    %1018 = vmatpush.msra.mxu0 %v1017
    %v1019 = vand.u32 %v12, 4294901760
    %1020 = vmatpush.msra.mxu0 %v1019
    %v1021 = vsub.f32 %v780, %v780
    %v1022 = vand.u32 %v1021, 4294901760
    %1023 = vmatmul.f32.gmra.mxu0 %v1022
    %v1024 = vpop.f32.mrf.mxu0
    %v1025 = vadd.f32 %v983, %v1024
    %v1026 = vsub.f32 %v781, %v781
    %v1027 = vand.u32 %v1026, 4294901760
    %1028 = vmatmul.f32.gmra.mxu0 %v1027
    %v1029 = vpop.f32.mrf.mxu0
    %v1030 = vadd.f32 %v987, %v1029
    %1031 = vdwg.mxu0
    %v1032 = vand.u32 %v27, 4294901760
    %v1033 = vsub.f32 %v27, %v1032
    %v1034 = vand.u32 %v1033, 4294901760
    %1035 = vmatpush.msra.mxu0 %v1034
    %v1036 = vand.u32 %v26, 4294901760
    %v1037 = vsub.f32 %v26, %v1036
    %v1038 = vand.u32 %v1037, 4294901760
    %1039 = vmatpush.msra.mxu0 %v1038
    %v1040 = vand.u32 %v25, 4294901760
    %v1041 = vsub.f32 %v25, %v1040
    %v1042 = vand.u32 %v1041, 4294901760
    %1043 = vmatpush.msra.mxu0 %v1042
    %v1044 = vand.u32 %v24, 4294901760
    %v1045 = vsub.f32 %v24, %v1044
    %v1046 = vand.u32 %v1045, 4294901760
    %1047 = vmatpush.msra.mxu0 %v1046
    %v1048 = vand.u32 %v23, 4294901760
    %v1049 = vsub.f32 %v23, %v1048
    %v1050 = vand.u32 %v1049, 4294901760
    %1051 = vmatpush.msra.mxu0 %v1050
    %v1052 = vand.u32 %v22, 4294901760
    %v1053 = vsub.f32 %v22, %v1052
    %v1054 = vand.u32 %v1053, 4294901760
    %1055 = vmatpush.msra.mxu0 %v1054
    %v1056 = vand.u32 %v21, 4294901760
    %v1057 = vsub.f32 %v21, %v1056
    %v1058 = vand.u32 %v1057, 4294901760
    %1059 = vmatpush.msra.mxu0 %v1058
    %v1060 = vand.u32 %v20, 4294901760
    %v1061 = vsub.f32 %v20, %v1060
    %v1062 = vand.u32 %v1061, 4294901760
    %1063 = vmatpush.msra.mxu0 %v1062
    %v1064 = vand.u32 %v19, 4294901760
    %v1065 = vsub.f32 %v19, %v1064
    %v1066 = vand.u32 %v1065, 4294901760
    %1067 = vmatpush.msra.mxu0 %v1066
    %v1068 = vand.u32 %v18, 4294901760
    %v1069 = vsub.f32 %v18, %v1068
    %v1070 = vand.u32 %v1069, 4294901760
    %1071 = vmatpush.msra.mxu0 %v1070
    %v1072 = vand.u32 %v17, 4294901760
    %v1073 = vsub.f32 %v17, %v1072
    %v1074 = vand.u32 %v1073, 4294901760
    %1075 = vmatpush.msra.mxu0 %v1074
    %v1076 = vand.u32 %v16, 4294901760
    %v1077 = vsub.f32 %v16, %v1076
    %v1078 = vand.u32 %v1077, 4294901760
    %1079 = vmatpush.msra.mxu0 %v1078
    %v1080 = vand.u32 %v15, 4294901760
    %v1081 = vsub.f32 %v15, %v1080
    %v1082 = vand.u32 %v1081, 4294901760
    %1083 = vmatpush.msra.mxu0 %v1082
    %v1084 = vand.u32 %v14, 4294901760
    %v1085 = vsub.f32 %v14, %v1084
    %v1086 = vand.u32 %v1085, 4294901760
    %1087 = vmatpush.msra.mxu0 %v1086
    %v1088 = vand.u32 %v13, 4294901760
    %v1089 = vsub.f32 %v13, %v1088
    %v1090 = vand.u32 %v1089, 4294901760
    %1091 = vmatpush.msra.mxu0 %v1090
    %v1092 = vand.u32 %v12, 4294901760
    %v1093 = vsub.f32 %v12, %v1092
    %v1094 = vand.u32 %v1093, 4294901760
    %1095 = vmatpush.msra.mxu0 %v1094
    %1096 = vmatmul.f32.gmra.mxu0 %v780
    %v1097 = vpop.f32.mrf.mxu0
    %v1098 = vadd.f32 %v1025, %v1097
    %1099 = vmatmul.f32.gmra.mxu0 %v781
    %v1100 = vpop.f32.mrf.mxu0
    %v1101 = vadd.f32 %v1030, %v1100
    %1102 = vdwg.mxu0
    %v1103 = vand.u32 %v27, 4294901760
    %1104 = vmatpush.msra.mxu0 %v1103
    %v1105 = vand.u32 %v26, 4294901760
    %1106 = vmatpush.msra.mxu0 %v1105
    %v1107 = vand.u32 %v25, 4294901760
    %1108 = vmatpush.msra.mxu0 %v1107
    %v1109 = vand.u32 %v24, 4294901760
    %1110 = vmatpush.msra.mxu0 %v1109
    %v1111 = vand.u32 %v23, 4294901760
    %1112 = vmatpush.msra.mxu0 %v1111
    %v1113 = vand.u32 %v22, 4294901760
    %1114 = vmatpush.msra.mxu0 %v1113
    %v1115 = vand.u32 %v21, 4294901760
    %1116 = vmatpush.msra.mxu0 %v1115
    %v1117 = vand.u32 %v20, 4294901760
    %1118 = vmatpush.msra.mxu0 %v1117
    %v1119 = vand.u32 %v19, 4294901760
    %1120 = vmatpush.msra.mxu0 %v1119
    %v1121 = vand.u32 %v18, 4294901760
    %1122 = vmatpush.msra.mxu0 %v1121
    %v1123 = vand.u32 %v17, 4294901760
    %1124 = vmatpush.msra.mxu0 %v1123
    %v1125 = vand.u32 %v16, 4294901760
    %1126 = vmatpush.msra.mxu0 %v1125
    %v1127 = vand.u32 %v15, 4294901760
    %1128 = vmatpush.msra.mxu0 %v1127
    %v1129 = vand.u32 %v14, 4294901760
    %1130 = vmatpush.msra.mxu0 %v1129
    %v1131 = vand.u32 %v13, 4294901760
    %1132 = vmatpush.msra.mxu0 %v1131
    %v1133 = vand.u32 %v12, 4294901760
    %1134 = vmatpush.msra.mxu0 %v1133
    %1135 = vmatmul.f32.gmra.mxu0 %v780
    %v1136 = vpop.f32.mrf.mxu0
    %v1137 = vadd.f32 %v1098, %v1136
    %1138 = vmatmul.f32.gmra.mxu0 %v781
    %v1139 = vpop.f32.mrf.mxu0
    %v1140 = vadd.f32 %v1101, %v1139
    %1141 = vdwg.mxu0
    %1142 = vset.pattern.permute.xlu0 3
    %1143 = vperm.xlu0 %1142, %v28
    %v1144 = vpop.permute.xlu0 %1143
    %1145 = vset.pattern.permute.xlu0 3
    %1146 = vperm.xlu0 %1145, %v29
    %v1147 = vpop.permute.xlu0 %1146
    %vm1148 = vcmp.eq.s32.totalorder %v31, %v1144
    %vm1149 = vcmp.eq.s32.totalorder %v31, %v1147
    %v1150 = vsel %vm1148, 1.0, 0.0
    %v1151 = vsel %vm1149, 1.0, 0.0
    %v1152 = vand.u32 %v27, 4294901760
    %1153 = vmatpush.msra.mxu0 %v1152
    %v1154 = vand.u32 %v26, 4294901760
    %1155 = vmatpush.msra.mxu0 %v1154
    %v1156 = vand.u32 %v25, 4294901760
    %1157 = vmatpush.msra.mxu0 %v1156
    %v1158 = vand.u32 %v24, 4294901760
    %1159 = vmatpush.msra.mxu0 %v1158
    %v1160 = vand.u32 %v23, 4294901760
    %1161 = vmatpush.msra.mxu0 %v1160
    %v1162 = vand.u32 %v22, 4294901760
    %1163 = vmatpush.msra.mxu0 %v1162
    %v1164 = vand.u32 %v21, 4294901760
    %1165 = vmatpush.msra.mxu0 %v1164
    %v1166 = vand.u32 %v20, 4294901760
    %1167 = vmatpush.msra.mxu0 %v1166
    %v1168 = vand.u32 %v19, 4294901760
    %1169 = vmatpush.msra.mxu0 %v1168
    %v1170 = vand.u32 %v18, 4294901760
    %1171 = vmatpush.msra.mxu0 %v1170
    %v1172 = vand.u32 %v17, 4294901760
    %1173 = vmatpush.msra.mxu0 %v1172
    %v1174 = vand.u32 %v16, 4294901760
    %1175 = vmatpush.msra.mxu0 %v1174
    %v1176 = vand.u32 %v15, 4294901760
    %1177 = vmatpush.msra.mxu0 %v1176
    %v1178 = vand.u32 %v14, 4294901760
    %1179 = vmatpush.msra.mxu0 %v1178
    %v1180 = vand.u32 %v13, 4294901760
    %1181 = vmatpush.msra.mxu0 %v1180
    %v1182 = vand.u32 %v12, 4294901760
    %1183 = vmatpush.msra.mxu0 %v1182
    %v1184 = vsub.f32 %v1150, %v1150
    %v1185 = vand.u32 %v1184, 4294901760
    %v1186 = vsub.f32 %v1184, %v1185
    %v1187 = vand.u32 %v1186, 4294901760
    %1188 = vmatmul.f32.gmra.mxu0 %v1187
    %v1189 = vpop.f32.mrf.mxu0
    %v1190 = vadd.f32 0.0, %v1189
    %v1191 = vsub.f32 %v1151, %v1151
    %v1192 = vand.u32 %v1191, 4294901760
    %v1193 = vsub.f32 %v1191, %v1192
    %v1194 = vand.u32 %v1193, 4294901760
    %1195 = vmatmul.f32.gmra.mxu0 %v1194
    %v1196 = vpop.f32.mrf.mxu0
    %v1197 = vadd.f32 0.0, %v1196
    %1198 = vdwg.mxu0
    %v1199 = vand.u32 %v27, 4294901760
    %v1200 = vsub.f32 %v27, %v1199
    %v1201 = vand.u32 %v1200, 4294901760
    %v1202 = vsub.f32 %v1200, %v1201
    %v1203 = vand.u32 %v1202, 4294901760
    %1204 = vmatpush.msra.mxu0 %v1203
    %v1205 = vand.u32 %v26, 4294901760
    %v1206 = vsub.f32 %v26, %v1205
    %v1207 = vand.u32 %v1206, 4294901760
    %v1208 = vsub.f32 %v1206, %v1207
    %v1209 = vand.u32 %v1208, 4294901760
    %1210 = vmatpush.msra.mxu0 %v1209
    %v1211 = vand.u32 %v25, 4294901760
    %v1212 = vsub.f32 %v25, %v1211
    %v1213 = vand.u32 %v1212, 4294901760
    %v1214 = vsub.f32 %v1212, %v1213
    %v1215 = vand.u32 %v1214, 4294901760
    %1216 = vmatpush.msra.mxu0 %v1215
    %v1217 = vand.u32 %v24, 4294901760
    %v1218 = vsub.f32 %v24, %v1217
    %v1219 = vand.u32 %v1218, 4294901760
    %v1220 = vsub.f32 %v1218, %v1219
    %v1221 = vand.u32 %v1220, 4294901760
    %1222 = vmatpush.msra.mxu0 %v1221
    %v1223 = vand.u32 %v23, 4294901760
    %v1224 = vsub.f32 %v23, %v1223
    %v1225 = vand.u32 %v1224, 4294901760
    %v1226 = vsub.f32 %v1224, %v1225
    %v1227 = vand.u32 %v1226, 4294901760
    %1228 = vmatpush.msra.mxu0 %v1227
    %v1229 = vand.u32 %v22, 4294901760
    %v1230 = vsub.f32 %v22, %v1229
    %v1231 = vand.u32 %v1230, 4294901760
    %v1232 = vsub.f32 %v1230, %v1231
    %v1233 = vand.u32 %v1232, 4294901760
    %1234 = vmatpush.msra.mxu0 %v1233
    %v1235 = vand.u32 %v21, 4294901760
    %v1236 = vsub.f32 %v21, %v1235
    %v1237 = vand.u32 %v1236, 4294901760
    %v1238 = vsub.f32 %v1236, %v1237
    %v1239 = vand.u32 %v1238, 4294901760
    %1240 = vmatpush.msra.mxu0 %v1239
    %v1241 = vand.u32 %v20, 4294901760
    %v1242 = vsub.f32 %v20, %v1241
    %v1243 = vand.u32 %v1242, 4294901760
    %v1244 = vsub.f32 %v1242, %v1243
    %v1245 = vand.u32 %v1244, 4294901760
    %1246 = vmatpush.msra.mxu0 %v1245
    %v1247 = vand.u32 %v19, 4294901760
    %v1248 = vsub.f32 %v19, %v1247
    %v1249 = vand.u32 %v1248, 4294901760
    %v1250 = vsub.f32 %v1248, %v1249
    %v1251 = vand.u32 %v1250, 4294901760
    %1252 = vmatpush.msra.mxu0 %v1251
    %v1253 = vand.u32 %v18, 4294901760
    %v1254 = vsub.f32 %v18, %v1253
    %v1255 = vand.u32 %v1254, 4294901760
    %v1256 = vsub.f32 %v1254, %v1255
    %v1257 = vand.u32 %v1256, 4294901760
    %1258 = vmatpush.msra.mxu0 %v1257
    %v1259 = vand.u32 %v17, 4294901760
    %v1260 = vsub.f32 %v17, %v1259
    %v1261 = vand.u32 %v1260, 4294901760
    %v1262 = vsub.f32 %v1260, %v1261
    %v1263 = vand.u32 %v1262, 4294901760
    %1264 = vmatpush.msra.mxu0 %v1263
    %v1265 = vand.u32 %v16, 4294901760
    %v1266 = vsub.f32 %v16, %v1265
    %v1267 = vand.u32 %v1266, 4294901760
    %v1268 = vsub.f32 %v1266, %v1267
    %v1269 = vand.u32 %v1268, 4294901760
    %1270 = vmatpush.msra.mxu0 %v1269
    %v1271 = vand.u32 %v15, 4294901760
    %v1272 = vsub.f32 %v15, %v1271
    %v1273 = vand.u32 %v1272, 4294901760
    %v1274 = vsub.f32 %v1272, %v1273
    %v1275 = vand.u32 %v1274, 4294901760
    %1276 = vmatpush.msra.mxu0 %v1275
    %v1277 = vand.u32 %v14, 4294901760
    %v1278 = vsub.f32 %v14, %v1277
    %v1279 = vand.u32 %v1278, 4294901760
    %v1280 = vsub.f32 %v1278, %v1279
    %v1281 = vand.u32 %v1280, 4294901760
    %1282 = vmatpush.msra.mxu0 %v1281
    %v1283 = vand.u32 %v13, 4294901760
    %v1284 = vsub.f32 %v13, %v1283
    %v1285 = vand.u32 %v1284, 4294901760
    %v1286 = vsub.f32 %v1284, %v1285
    %v1287 = vand.u32 %v1286, 4294901760
    %1288 = vmatpush.msra.mxu0 %v1287
    %v1289 = vand.u32 %v12, 4294901760
    %v1290 = vsub.f32 %v12, %v1289
    %v1291 = vand.u32 %v1290, 4294901760
    %v1292 = vsub.f32 %v1290, %v1291
    %v1293 = vand.u32 %v1292, 4294901760
    %1294 = vmatpush.msra.mxu0 %v1293
    %1295 = vmatmul.f32.gmra.mxu0 %v1150
    %v1296 = vpop.f32.mrf.mxu0
    %v1297 = vadd.f32 %v1190, %v1296
    %1298 = vmatmul.f32.gmra.mxu0 %v1151
    %v1299 = vpop.f32.mrf.mxu0
    %v1300 = vadd.f32 %v1197, %v1299
    %1301 = vdwg.mxu0
    %v1302 = vand.u32 %v27, 4294901760
    %v1303 = vsub.f32 %v27, %v1302
    %1304 = vmatpush.msra.mxu0 %v1303
    %v1305 = vand.u32 %v26, 4294901760
    %v1306 = vsub.f32 %v26, %v1305
    %1307 = vmatpush.msra.mxu0 %v1306
    %v1308 = vand.u32 %v25, 4294901760
    %v1309 = vsub.f32 %v25, %v1308
    %1310 = vmatpush.msra.mxu0 %v1309
    %v1311 = vand.u32 %v24, 4294901760
    %v1312 = vsub.f32 %v24, %v1311
    %1313 = vmatpush.msra.mxu0 %v1312
    %v1314 = vand.u32 %v23, 4294901760
    %v1315 = vsub.f32 %v23, %v1314
    %1316 = vmatpush.msra.mxu0 %v1315
    %v1317 = vand.u32 %v22, 4294901760
    %v1318 = vsub.f32 %v22, %v1317
    %1319 = vmatpush.msra.mxu0 %v1318
    %v1320 = vand.u32 %v21, 4294901760
    %v1321 = vsub.f32 %v21, %v1320
    %1322 = vmatpush.msra.mxu0 %v1321
    %v1323 = vand.u32 %v20, 4294901760
    %v1324 = vsub.f32 %v20, %v1323
    %1325 = vmatpush.msra.mxu0 %v1324
    %v1326 = vand.u32 %v19, 4294901760
    %v1327 = vsub.f32 %v19, %v1326
    %1328 = vmatpush.msra.mxu0 %v1327
    %v1329 = vand.u32 %v18, 4294901760
    %v1330 = vsub.f32 %v18, %v1329
    %1331 = vmatpush.msra.mxu0 %v1330
    %v1332 = vand.u32 %v17, 4294901760
    %v1333 = vsub.f32 %v17, %v1332
    %1334 = vmatpush.msra.mxu0 %v1333
    %v1335 = vand.u32 %v16, 4294901760
    %v1336 = vsub.f32 %v16, %v1335
    %1337 = vmatpush.msra.mxu0 %v1336
    %v1338 = vand.u32 %v15, 4294901760
    %v1339 = vsub.f32 %v15, %v1338
    %1340 = vmatpush.msra.mxu0 %v1339
    %v1341 = vand.u32 %v14, 4294901760
    %v1342 = vsub.f32 %v14, %v1341
    %1343 = vmatpush.msra.mxu0 %v1342
    %v1344 = vand.u32 %v13, 4294901760
    %v1345 = vsub.f32 %v13, %v1344
    %1346 = vmatpush.msra.mxu0 %v1345
    %v1347 = vand.u32 %v12, 4294901760
    %v1348 = vsub.f32 %v12, %v1347
    %1349 = vmatpush.msra.mxu0 %v1348
    %v1350 = vsub.f32 %v1150, %v1150
    %1351 = vmatmul.f32.gmra.mxu0 %v1350
    %v1352 = vpop.f32.mrf.mxu0
    %v1353 = vadd.f32 %v1297, %v1352
    %v1354 = vsub.f32 %v1151, %v1151
    %1355 = vmatmul.f32.gmra.mxu0 %v1354
    %v1356 = vpop.f32.mrf.mxu0
    %v1357 = vadd.f32 %v1300, %v1356
    %1358 = vdwg.mxu0
    %v1359 = vand.u32 %v27, 4294901760
    %1360 = vmatpush.msra.mxu0 %v1359
    %v1361 = vand.u32 %v26, 4294901760
    %1362 = vmatpush.msra.mxu0 %v1361
    %v1363 = vand.u32 %v25, 4294901760
    %1364 = vmatpush.msra.mxu0 %v1363
    %v1365 = vand.u32 %v24, 4294901760
    %1366 = vmatpush.msra.mxu0 %v1365
    %v1367 = vand.u32 %v23, 4294901760
    %1368 = vmatpush.msra.mxu0 %v1367
    %v1369 = vand.u32 %v22, 4294901760
    %1370 = vmatpush.msra.mxu0 %v1369
    %v1371 = vand.u32 %v21, 4294901760
    %1372 = vmatpush.msra.mxu0 %v1371
    %v1373 = vand.u32 %v20, 4294901760
    %1374 = vmatpush.msra.mxu0 %v1373
    %v1375 = vand.u32 %v19, 4294901760
    %1376 = vmatpush.msra.mxu0 %v1375
    %v1377 = vand.u32 %v18, 4294901760
    %1378 = vmatpush.msra.mxu0 %v1377
    %v1379 = vand.u32 %v17, 4294901760
    %1380 = vmatpush.msra.mxu0 %v1379
    %v1381 = vand.u32 %v16, 4294901760
    %1382 = vmatpush.msra.mxu0 %v1381
    %v1383 = vand.u32 %v15, 4294901760
    %1384 = vmatpush.msra.mxu0 %v1383
    %v1385 = vand.u32 %v14, 4294901760
    %1386 = vmatpush.msra.mxu0 %v1385
    %v1387 = vand.u32 %v13, 4294901760
    %1388 = vmatpush.msra.mxu0 %v1387
    %v1389 = vand.u32 %v12, 4294901760
    %1390 = vmatpush.msra.mxu0 %v1389
    %v1391 = vsub.f32 %v1150, %v1150
    %v1392 = vand.u32 %v1391, 4294901760
    %1393 = vmatmul.f32.gmra.mxu0 %v1392
    %v1394 = vpop.f32.mrf.mxu0
    %v1395 = vadd.f32 %v1353, %v1394
    %v1396 = vsub.f32 %v1151, %v1151
    %v1397 = vand.u32 %v1396, 4294901760
    %1398 = vmatmul.f32.gmra.mxu0 %v1397
    %v1399 = vpop.f32.mrf.mxu0
    %v1400 = vadd.f32 %v1357, %v1399
    %1401 = vdwg.mxu0
    %v1402 = vand.u32 %v27, 4294901760
    %v1403 = vsub.f32 %v27, %v1402
    %v1404 = vand.u32 %v1403, 4294901760
    %1405 = vmatpush.msra.mxu0 %v1404
    %v1406 = vand.u32 %v26, 4294901760
    %v1407 = vsub.f32 %v26, %v1406
    %v1408 = vand.u32 %v1407, 4294901760
    %1409 = vmatpush.msra.mxu0 %v1408
    %v1410 = vand.u32 %v25, 4294901760
    %v1411 = vsub.f32 %v25, %v1410
    %v1412 = vand.u32 %v1411, 4294901760
    %1413 = vmatpush.msra.mxu0 %v1412
    %v1414 = vand.u32 %v24, 4294901760
    %v1415 = vsub.f32 %v24, %v1414
    %v1416 = vand.u32 %v1415, 4294901760
    %1417 = vmatpush.msra.mxu0 %v1416
    %v1418 = vand.u32 %v23, 4294901760
    %v1419 = vsub.f32 %v23, %v1418
    %v1420 = vand.u32 %v1419, 4294901760
    %1421 = vmatpush.msra.mxu0 %v1420
    %v1422 = vand.u32 %v22, 4294901760
    %v1423 = vsub.f32 %v22, %v1422
    %v1424 = vand.u32 %v1423, 4294901760
    %1425 = vmatpush.msra.mxu0 %v1424
    %v1426 = vand.u32 %v21, 4294901760
    %v1427 = vsub.f32 %v21, %v1426
    %v1428 = vand.u32 %v1427, 4294901760
    %1429 = vmatpush.msra.mxu0 %v1428
    %v1430 = vand.u32 %v20, 4294901760
    %v1431 = vsub.f32 %v20, %v1430
    %v1432 = vand.u32 %v1431, 4294901760
    %1433 = vmatpush.msra.mxu0 %v1432
    %v1434 = vand.u32 %v19, 4294901760
    %v1435 = vsub.f32 %v19, %v1434
    %v1436 = vand.u32 %v1435, 4294901760
    %1437 = vmatpush.msra.mxu0 %v1436
    %v1438 = vand.u32 %v18, 4294901760
    %v1439 = vsub.f32 %v18, %v1438
    %v1440 = vand.u32 %v1439, 4294901760
    %1441 = vmatpush.msra.mxu0 %v1440
    %v1442 = vand.u32 %v17, 4294901760
    %v1443 = vsub.f32 %v17, %v1442
    %v1444 = vand.u32 %v1443, 4294901760
    %1445 = vmatpush.msra.mxu0 %v1444
    %v1446 = vand.u32 %v16, 4294901760
    %v1447 = vsub.f32 %v16, %v1446
    %v1448 = vand.u32 %v1447, 4294901760
    %1449 = vmatpush.msra.mxu0 %v1448
    %v1450 = vand.u32 %v15, 4294901760
    %v1451 = vsub.f32 %v15, %v1450
    %v1452 = vand.u32 %v1451, 4294901760
    %1453 = vmatpush.msra.mxu0 %v1452
    %v1454 = vand.u32 %v14, 4294901760
    %v1455 = vsub.f32 %v14, %v1454
    %v1456 = vand.u32 %v1455, 4294901760
    %1457 = vmatpush.msra.mxu0 %v1456
    %v1458 = vand.u32 %v13, 4294901760
    %v1459 = vsub.f32 %v13, %v1458
    %v1460 = vand.u32 %v1459, 4294901760
    %1461 = vmatpush.msra.mxu0 %v1460
    %v1462 = vand.u32 %v12, 4294901760
    %v1463 = vsub.f32 %v12, %v1462
    %v1464 = vand.u32 %v1463, 4294901760
    %1465 = vmatpush.msra.mxu0 %v1464
    %1466 = vmatmul.f32.gmra.mxu0 %v1150
    %v1467 = vpop.f32.mrf.mxu0
    %v1468 = vadd.f32 %v1395, %v1467
    %1469 = vmatmul.f32.gmra.mxu0 %v1151
    %v1470 = vpop.f32.mrf.mxu0
    %v1471 = vadd.f32 %v1400, %v1470
    %1472 = vdwg.mxu0
    %v1473 = vand.u32 %v27, 4294901760
    %1474 = vmatpush.msra.mxu0 %v1473
    %v1475 = vand.u32 %v26, 4294901760
    %1476 = vmatpush.msra.mxu0 %v1475
    %v1477 = vand.u32 %v25, 4294901760
    %1478 = vmatpush.msra.mxu0 %v1477
    %v1479 = vand.u32 %v24, 4294901760
    %1480 = vmatpush.msra.mxu0 %v1479
    %v1481 = vand.u32 %v23, 4294901760
    %1482 = vmatpush.msra.mxu0 %v1481
    %v1483 = vand.u32 %v22, 4294901760
    %1484 = vmatpush.msra.mxu0 %v1483
    %v1485 = vand.u32 %v21, 4294901760
    %1486 = vmatpush.msra.mxu0 %v1485
    %v1487 = vand.u32 %v20, 4294901760
    %1488 = vmatpush.msra.mxu0 %v1487
    %v1489 = vand.u32 %v19, 4294901760
    %1490 = vmatpush.msra.mxu0 %v1489
    %v1491 = vand.u32 %v18, 4294901760
    %1492 = vmatpush.msra.mxu0 %v1491
    %v1493 = vand.u32 %v17, 4294901760
    %1494 = vmatpush.msra.mxu0 %v1493
    %v1495 = vand.u32 %v16, 4294901760
    %1496 = vmatpush.msra.mxu0 %v1495
    %v1497 = vand.u32 %v15, 4294901760
    %1498 = vmatpush.msra.mxu0 %v1497
    %v1499 = vand.u32 %v14, 4294901760
    %1500 = vmatpush.msra.mxu0 %v1499
    %v1501 = vand.u32 %v13, 4294901760
    %1502 = vmatpush.msra.mxu0 %v1501
    %v1503 = vand.u32 %v12, 4294901760
    %1504 = vmatpush.msra.mxu0 %v1503
    %1505 = vmatmul.f32.gmra.mxu0 %v1150
    %v1506 = vpop.f32.mrf.mxu0
    %v1507 = vadd.f32 %v1468, %v1506
    %1508 = vmatmul.f32.gmra.mxu0 %v1151
    %v1509 = vpop.f32.mrf.mxu0
    %v1510 = vadd.f32 %v1471, %v1509
    %1511 = vdwg.mxu0
    %1514 = vrot.lane.b32.xlu0 %v767, 32
    %v1515 = vpop.permute.xlu0 %1514
    %1516 = vrot.lane.b32.xlu0 %v770, 32
    %v1517 = vpop.permute.xlu0 %1516
    %1522 = vrot.lane.b32.xlu0 %v1137, 64
    %v1523 = vpop.permute.xlu0 %1522
    %1524 = vrot.lane.b32.xlu0 %v1140, 64
    %v1525 = vpop.permute.xlu0 %1524
    %1530 = vrot.lane.b32.xlu0 %v1507, 96
    %v1531 = vpop.permute.xlu0 %1530
    %1532 = vrot.lane.b32.xlu0 %v1510, 96
    %v1533 = vpop.permute.xlu0 %1532
    %vm1536 = vcmask 261120
    %v1537 = vsel %vm1536, %v397, %v1515
    %v1538 = vsel %vm1536, %v400, %v1517
    %vm1539 = vcmask 523264
    %v1540 = vsel %vm1539, %v1537, %v1523
    %v1541 = vsel %vm1539, %v1538, %v1525
    %vm1542 = vcmask 785408
    %v1543 = vsel %vm1542, %v1540, %v1531
    %v1544 = vsel %vm1542, %v1541, %v1533
    %1545 = vst [vmem:[#allocation2] sm:$0xff] %v1543
    %1546 = vst [vmem:[#allocation2 + $0x8] sm:$0xff] %v1544
    // Predicated region
    $region10: #{tpu_custom_call.1} parent=1 // pred_check
      _
    $region11: #{tpu_custom_call.1} parent=1 // pred_check_branch
      %1548 = sbr.rel (0) target = $region13
    $region12: #{tpu_custom_call.1} parent=1 // pred_region
      %1550 = vsyncadd [#allocation3], 0
      %s1551 = sshll.u32 [#allocation2], 4
      %s1552 = int_to_ptr.vmem [resolvable:$true] %s1551
      %s1553 = sshll.u32 %s2, 4
      %s1554 = int_to_ptr.hbm [resolvable:$true] %s1553
      %1559 = dma.vmem_to_hbm [thread:$0]  %s1552, 256, %s1554, [#allocation3], 128, 128, 8
    $region13: #{tpu_custom_call.1} parent=1 // pred_fallthru
      _
    // Predicated region
    $region14: #{tpu_custom_call.1} parent=1 // pred_check
      _
    $region15: #{tpu_custom_call.1} parent=1 // pred_check_branch
      %1561 = sbr.rel (0) target = $region17
    $region16: #{tpu_custom_call.1} parent=1 // pred_region
      %1563 = dma.done [#allocation3], 256
    $region17: #{tpu_custom_call.1} parent=1 // pred_fallthru
      _
    %1564 = vsyncpa [#allocation3], 1

</llo_original>
